<compile_context>
chip_gen: v5e
topology: v5e:2x2
jax: 0.10.0
libtpu: 0.0.40
codegen_flags: <defaults>
</compile_context>

<pallas_src>
import functools

import jax
import jax.numpy as jnp
from jax.experimental import pallas as pl
from jax.experimental.pallas import tpu as pltpu


def _round_up(x: int, m: int) -> int:
    return (x + m - 1) // m * m


def _cdiv(a: int, b: int) -> int:
    return -(-a // b)


def _vmem_capacity_bytes() -> int:
    """Per-core VMEM capacity; conservative 64 MiB (v7x) if unknown."""
    try:
        info = pltpu.get_tpu_info()
        cap = getattr(info, "vmem_capacity_bytes", None)
        if cap:
            return int(cap)
    except Exception:
        pass
    return 64 * 1024 * 1024


def _tile_vmem_bytes(tm, tk, H_pad, C_pad, train):
    """Double-buffered input/output tiles + the f32 accumulator scratch."""
    x_b = tm * tk * 4 * 2             # f32 x tile (cast to bf16 in-kernel)
    w1_b = tk * H_pad * 2 * 2         # bf16 w1 tile (dominant stream)
    b1_b = H_pad * 4 * 2
    w2_b = H_pad * C_pad * 2 * 2
    b2_b = C_pad * 4 * 2
    out_b = tm * C_pad * 4 * 2
    acc_b = tm * H_pad * 4
    mask_b = tm * H_pad * 2 * 2 if train else 0
    return x_b + w1_b + b1_b + w2_b + b2_b + out_b + acc_b + mask_b


def _choose_tk(K_pad, tm, H_pad, C_pad, train, tk_max, vmem_budget):
    """Largest 128-multiple divisor of K_pad that fits tk_max and VMEM."""
    n = K_pad // 128
    best = 128
    for d in range(1, n + 1):
        if n % d:
            continue
        tk = d * 128
        if tk > tk_max:
            continue
        if _tile_vmem_bytes(tm, tk, H_pad, C_pad, train) > vmem_budget:
            continue
        best = max(best, tk)
    return best


def _mlp_kernel_eval(x_ref, w1_ref, b1_ref, w2_ref, b2_ref, out_ref, acc_ref):
    """grid = (M tiles, K tiles); K (fc1 reduction) is the innermost axis."""
    k = pl.program_id(1)

    @pl.when(k == 0)
    def _init():
        # Fold the fc1 bias into the accumulator init (saves a finalize add).
        acc_ref[...] = jnp.broadcast_to(b1_ref[...], acc_ref.shape)

    # Partial fc1 product for this K tile (bf16 operands, f32 accumulation);
    # x is cast to bf16 per tile inside the kernel.
    acc_ref[...] += jnp.dot(x_ref[...].astype(w1_ref.dtype), w1_ref[...],
                            preferred_element_type=jnp.float32)

    @pl.when(k == pl.num_programs(1) - 1)
    def _finalize():
        h = jnp.maximum(acc_ref[...], 0.0).astype(w2_ref.dtype)
        out = jnp.dot(h, w2_ref[...], preferred_element_type=jnp.float32)
        out_ref[...] = (out + b2_ref[...]).astype(out_ref.dtype)


def _mlp_kernel_train(x_ref, w1_ref, b1_ref, w2_ref, b2_ref, mask_ref,
                      out_ref, acc_ref, *, scale: float):
    k = pl.program_id(1)

    @pl.when(k == 0)
    def _init():
        acc_ref[...] = jnp.broadcast_to(b1_ref[...], acc_ref.shape)

    acc_ref[...] += jnp.dot(x_ref[...].astype(w1_ref.dtype), w1_ref[...],
                            preferred_element_type=jnp.float32)

    @pl.when(k == pl.num_programs(1) - 1)
    def _finalize():
        # ReLU + bf16 {0,1} keep mask, then fc2 on the MXU.  The scalar
        # 1/(1-p) commutes through the matmul -> apply to the (tm, C) result.
        h = jnp.maximum(acc_ref[...], 0.0).astype(w2_ref.dtype) * mask_ref[...]
        out = jnp.dot(h, w2_ref[...], preferred_element_type=jnp.float32)
        out_ref[...] = (out * scale + b2_ref[...]).astype(out_ref.dtype)


def prepare_params(w1, b1, w2, b2, compute_dtype=jnp.bfloat16):
    """Pad/cast weights ONCE; cache the returned dict across forward calls."""
    K, H = w1.shape
    C = w2.shape[1]
    K_pad = _round_up(K, 128)
    H_pad = _round_up(H, 128)
    C_pad = _round_up(C, 128)
    f32 = jnp.float32
    return {
        "w1": jnp.pad(w1.astype(compute_dtype), ((0, K_pad - K), (0, H_pad - H))),
        "b1": jnp.pad(jnp.reshape(b1, (1, H)).astype(f32), ((0, 0), (0, H_pad - H))),
        "w2": jnp.pad(w2.astype(compute_dtype), ((0, H_pad - H), (0, C_pad - C))),
        "b2": jnp.pad(jnp.reshape(b2, (1, C)).astype(f32), ((0, 0), (0, C_pad - C))),
        "K": K, "H": H, "C": C,
        "K_pad": K_pad, "H_pad": H_pad, "C_pad": C_pad,
    }


def mlp_forward(x, params, *, keep_mask=None, drop_p=0.5,
                tk_max=8192, tm_max=512):
    """Fused fc1 + ReLU + dropout + fc2.

    x: (B, K) f32; params: output of prepare_params().
    keep_mask: optional (B, H) {0,1} array -> train mode (inverted dropout).
    """
    B, K = x.shape
    assert K == params["K"], "x feature dim must match prepared weights"
    K_pad, H_pad, C_pad = params["K_pad"], params["H_pad"], params["C_pad"]
    C = params["C"]
    H = params["H"]
    train = keep_mask is not None
    f32 = jnp.float32

    # Batch tiling: minimal over-rounding (e.g. B=300 -> B_pad=304, not 512).
    B_pad8 = _round_up(B, 8)
    n_m = _cdiv(B_pad8, tm_max)
    tm = _round_up(_cdiv(B_pad8, n_m), 8)
    B_pad = n_m * tm

    # K tiling sized against this generation's VMEM (v7x: 64 MiB per core).
    cap = _vmem_capacity_bytes()
    budget = max(24 << 20, cap - (24 << 20))
    tk = _choose_tk(K_pad, tm, H_pad, C_pad, train, tk_max, budget)
    footprint = _tile_vmem_bytes(tm, tk, H_pad, C_pad, train)
    vmem_limit = int(min(cap - (8 << 20), max(footprint + (8 << 20), 32 << 20)))

    # x stays f32 (per-tile cast inside the kernel); pad only when needed.
    if B_pad != B or K_pad != K:
        x_p = jnp.pad(x.astype(f32), ((0, B_pad - B), (0, K_pad - K)))
    else:
        x_p = x.astype(f32)

    grid = (B_pad // tm, K_pad // tk)

    common_in_specs = [
        pl.BlockSpec((tm, tk), lambda m, k: (m, k)),         # x tile (f32)
        pl.BlockSpec((tk, H_pad), lambda m, k: (k, 0)),      # w1 tile (bf16)
        pl.BlockSpec((1, H_pad), lambda m, k: (0, 0)),       # b1 (f32)
        pl.BlockSpec((H_pad, C_pad), lambda m, k: (0, 0)),   # w2 (bf16)
        pl.BlockSpec((1, C_pad), lambda m, k: (0, 0)),       # b2 (f32)
    ]
    out_spec = pl.BlockSpec((tm, C_pad), lambda m, k: (m, 0))
    scratch = [pltpu.VMEM((tm, H_pad), jnp.float32)]         # fc1 accumulator
    cparams = pltpu.CompilerParams(
        dimension_semantics=("parallel", "arbitrary"),
        vmem_limit_bytes=vmem_limit,
    )
    out_shape = jax.ShapeDtypeStruct((B_pad, C_pad), f32)

    if train:
        # bf16 {0,1} mask: half the mask HBM bytes of f32; exact for 0/1.
        mask_p = jnp.pad(keep_mask.astype(jnp.bfloat16),
                         ((0, B_pad - B), (0, H_pad - H)))
        # Note: scale is baked as a Python float -> distinct drop_p values
        # trigger separate compiles (acceptable; documented).
        kernel = functools.partial(_mlp_kernel_train,
                                   scale=1.0 / (1.0 - drop_p))
        out_p = pl.pallas_call(
            kernel,
            out_shape=out_shape,
            grid_spec=pltpu.PrefetchScalarGridSpec(
                num_scalar_prefetch=0,
                grid=grid,
                in_specs=common_in_specs + [
                    pl.BlockSpec((tm, H_pad), lambda m, k: (m, 0)),  # keep mask
                ],
                out_specs=out_spec,
                scratch_shapes=scratch,
            ),
            compiler_params=cparams,
        )(x_p, params["w1"], params["b1"], params["w2"], params["b2"], mask_p)
    else:
        # Eval: no mask input, no mask DMA, no multiply.
        out_p = pl.pallas_call(
            _mlp_kernel_eval,
            out_shape=out_shape,
            grid_spec=pltpu.PrefetchScalarGridSpec(
                num_scalar_prefetch=0,
                grid=grid,
                in_specs=common_in_specs,
                out_specs=out_spec,
                scratch_shapes=scratch,
            ),
            compiler_params=cparams,
        )(x_p, params["w1"], params["b1"], params["w2"], params["b2"])

    return out_p[:B, :C]


def init_params(key, input_size, hidden_size, num_classes):
    """PyTorch nn.Linear-style init (U(-k, k), k = 1/sqrt(fan_in)).

    Weights stored as (in, out) == PyTorch weight.T, so the kernel does x @ W.
    """
    k1, k2, k3, k4 = jax.random.split(key, 4)
    lim1 = 1.0 / jnp.sqrt(jnp.float32(input_size))
    lim2 = 1.0 / jnp.sqrt(jnp.float32(hidden_size))
    w1 = jax.random.uniform(k1, (input_size, hidden_size), jnp.float32, -lim1, lim1)
    b1 = jax.random.uniform(k2, (1, hidden_size), jnp.float32, -lim1, lim1)
    w2 = jax.random.uniform(k3, (hidden_size, num_classes), jnp.float32, -lim2, lim2)
    b2 = jax.random.uniform(k4, (1, num_classes), jnp.float32, -lim2, lim2)
    return w1, b1, w2, b2


if __name__ == "__main__":
    # Small shapes consistent with the module: x flattened to (B, 3*H*W).
    B = 8
    input_size = 3 * 16 * 16      # small stand-in for 3*96*96
    hidden_size = 120             # small stand-in for 500 (exercises H->128 pad)
    num_classes = 10

    key = jax.random.PRNGKey(0)
    kx, kp, kd = jax.random.split(key, 3)
    x = jax.random.normal(kx, (B, input_size), jnp.float32)
    w1, b1, w2, b2 = init_params(kp, input_size, hidden_size, num_classes)

    # Pad/cast the weights once; reuse across forward calls.
    params = prepare_params(w1, b1, w2, b2)

    # References at the kernel's compute precision (bf16 operands, f32 acc).
    xb = x.astype(jnp.bfloat16).astype(jnp.float32)
    w1b = w1.astype(jnp.bfloat16).astype(jnp.float32)
    w2b = w2.astype(jnp.bfloat16).astype(jnp.float32)
    h_ref = jnp.maximum(xb @ w1b + b1, 0.0)

    # Eval mode (dropout = identity). tk_max=256 -> 3 K tiles, exercises grid.
    out_eval = jax.block_until_ready(mlp_forward(x, params, tk_max=256))
    ref_eval = h_ref.astype(jnp.bfloat16).astype(jnp.float32) @ w2b + b2
    assert out_eval.shape == (B, num_classes)
    assert jnp.allclose(out_eval, ref_eval, atol=2e-2, rtol=2e-2)

    # Train mode: element-wise dropout, p = 0.5, host-generated keep mask.
    drop_p = 0.5
    keep = jax.random.bernoulli(kd, 1.0 - drop_p, (B, hidden_size))
    out_train = jax.block_until_ready(
        mlp_forward(x, params, keep_mask=keep, drop_p=drop_p, tk_max=256))
    h_drop = (h_ref * keep).astype(jnp.bfloat16).astype(jnp.float32)
    ref_train = (h_drop @ w2b) / (1.0 - drop_p) + b2
    assert out_train.shape == (B, num_classes)
    assert jnp.allclose(out_train, ref_train, atol=2e-2, rtol=2e-2)

    print("KERNEL_OK")
</pallas_src>

<mosaic_0001>
module attributes {stable_mosaic.version = 11 : i64} {
  func.func @_mlp_kernel_eval(%arg0: i32, %arg1: i32, %arg2: memref<8x256xf32, #tpu.memory_space<vmem>>, %arg3: memref<256x128xbf16, #tpu.memory_space<vmem>>, %arg4: memref<1x128xf32, #tpu.memory_space<vmem>>, %arg5: memref<128x128xbf16, #tpu.memory_space<vmem>>, %arg6: memref<1x128xf32, #tpu.memory_space<vmem>>, %arg7: memref<8x128xf32, #tpu.memory_space<vmem>>, %arg8: memref<8x128xf32, #tpu.memory_space<vmem>>) attributes {dimension_semantics = [#tpu.dimension_semantics<parallel>, #tpu.dimension_semantics<arbitrary>], iteration_bounds = array<i64: 1, 3>, scalar_prefetch = 0 : i64, scratch_operands = 1 : i64, tpu.core_type = #tpu.core_type<tc>, window_params = [{transform_indices = @transform_0, window_bounds = array<i64: 8, 256>}, {transform_indices = @transform_1, window_bounds = array<i64: 256, 128>}, {pipeline_mode = #tpu.pipeline_mode<synchronous>, transform_indices = @transform_2, window_bounds = array<i64: 1, 128>}, {pipeline_mode = #tpu.pipeline_mode<synchronous>, transform_indices = @transform_3, window_bounds = array<i64: 128, 128>}, {pipeline_mode = #tpu.pipeline_mode<synchronous>, transform_indices = @transform_4, window_bounds = array<i64: 1, 128>}, {transform_indices = @transform_5, window_bounds = array<i64: 8, 128>}]} {
    %c0_i32 = arith.constant 0 : i32
    %0 = arith.cmpi eq, %arg1, %c0_i32 : i32
    %1 = arith.extui %0 : i1 to i32
    %c0_i32_0 = arith.constant 0 : i32
    %2 = arith.cmpi ne, %1, %c0_i32_0 : i32
    scf.if %2 {
      %c0_9 = arith.constant 0 : index
      %c0_10 = arith.constant 0 : index
      %13 = vector.load %arg4[%c0_9, %c0_10] : memref<1x128xf32, #tpu.memory_space<vmem>>, vector<1x128xf32>
      %14 = vector.shape_cast %13 : vector<1x128xf32> to vector<1x128xf32>
      %15 = vector.broadcast %14 : vector<1x128xf32> to vector<8x128xf32>
      %c0_11 = arith.constant 0 : index
      %c0_12 = arith.constant 0 : index
      %16 = vector.load %arg8[%c0_11, %c0_12] : memref<8x128xf32, #tpu.memory_space<vmem>>, vector<8x128xf32>
      tpu.vector_store %arg8[%c0_11, %c0_12], %15 {strides = array<i32>} : memref<8x128xf32, #tpu.memory_space<vmem>>, vector<8x128xf32>,
    } else {
    }
    %c0 = arith.constant 0 : index
    %c0_1 = arith.constant 0 : index
    %3 = vector.load %arg8[%c0, %c0_1] : memref<8x128xf32, #tpu.memory_space<vmem>>, vector<8x128xf32>
    %c0_2 = arith.constant 0 : index
    %c0_3 = arith.constant 0 : index
    %4 = vector.load %arg2[%c0_2, %c0_3] : memref<8x256xf32, #tpu.memory_space<vmem>>, vector<8x256xf32>
    %5 = arith.truncf %4 : vector<8x256xf32> to vector<8x256xbf16>
    %c0_4 = arith.constant 0 : index
    %c0_5 = arith.constant 0 : index
    %6 = vector.load %arg3[%c0_4, %c0_5] : memref<256x128xbf16, #tpu.memory_space<vmem>>, vector<256x128xbf16>
    %cst = arith.constant dense<0.000000e+00> : vector<8x128xf32>
    %7 = tpu.matmul %5, %6, %cst {dimension_numbers = #tpu.dot_dimension_numbers<[1], [0], [0], [1], [0, 0, 1, 1], [], []>} : vector<8x256xbf16>, vector<256x128xbf16>, vector<8x128xf32> -> vector<8x128xf32>
    %8 = arith.addf %3, %7 : vector<8x128xf32>
    %c0_6 = arith.constant 0 : index
    %c0_7 = arith.constant 0 : index
    %9 = vector.load %arg8[%c0_6, %c0_7] : memref<8x128xf32, #tpu.memory_space<vmem>>, vector<8x128xf32>
    tpu.vector_store %arg8[%c0_6, %c0_7], %8 {strides = array<i32>} : memref<8x128xf32, #tpu.memory_space<vmem>>, vector<8x128xf32>,
    %c2_i32 = arith.constant 2 : i32
    %10 = arith.cmpi eq, %arg1, %c2_i32 : i32
    %11 = arith.extui %10 : i1 to i32
    %c0_i32_8 = arith.constant 0 : i32
    %12 = arith.cmpi ne, %11, %c0_i32_8 : i32
    scf.if %12 {
      %c0_9 = arith.constant 0 : index
      %c0_10 = arith.constant 0 : index
      %13 = vector.load %arg8[%c0_9, %c0_10] : memref<8x128xf32, #tpu.memory_space<vmem>>, vector<8x128xf32>
      %cst_11 = arith.constant 0.000000e+00 : f32
      %14 = vector.broadcast %cst_11 : f32 to vector<8x128xf32>
      %15 = arith.maximumf %13, %14 : vector<8x128xf32>
      %16 = arith.truncf %15 : vector<8x128xf32> to vector<8x128xbf16>
      %c0_12 = arith.constant 0 : index
      %c0_13 = arith.constant 0 : index
      %17 = vector.load %arg5[%c0_12, %c0_13] : memref<128x128xbf16, #tpu.memory_space<vmem>>, vector<128x128xbf16>
      %cst_14 = arith.constant dense<0.000000e+00> : vector<8x128xf32>
      %18 = tpu.matmul %16, %17, %cst_14 {dimension_numbers = #tpu.dot_dimension_numbers<[1], [0], [0], [1], [0, 0, 1, 1], [], []>} : vector<8x128xbf16>, vector<128x128xbf16>, vector<8x128xf32> -> vector<8x128xf32>
      %c0_15 = arith.constant 0 : index
      %c0_16 = arith.constant 0 : index
      %19 = vector.load %arg6[%c0_15, %c0_16] : memref<1x128xf32, #tpu.memory_space<vmem>>, vector<1x128xf32>
      %20 = vector.broadcast %19 : vector<1x128xf32> to vector<8x128xf32>
      %21 = arith.addf %18, %20 : vector<8x128xf32>
      %c0_17 = arith.constant 0 : index
      %c0_18 = arith.constant 0 : index
      %22 = vector.load %arg7[%c0_17, %c0_18] : memref<8x128xf32, #tpu.memory_space<vmem>>, vector<8x128xf32>
      tpu.vector_store %arg7[%c0_17, %c0_18], %21 {strides = array<i32>} : memref<8x128xf32, #tpu.memory_space<vmem>>, vector<8x128xf32>,
    } else {
    }
    return
  }
  func.func @transform_0(%arg0: i32, %arg1: i32) -> (i32, i32) {
    %c0_i32 = arith.constant 0 : i32
    return %arg0, %arg1 : i32, i32
  }
  func.func @transform_1(%arg0: i32, %arg1: i32) -> (i32, i32) {
    %c0_i32 = arith.constant 0 : i32
    %c0_i32_0 = arith.constant 0 : i32
    return %arg1, %c0_i32 : i32, i32
  }
  func.func @transform_2(%arg0: i32, %arg1: i32) -> (i32, i32) {
    %c0_i32 = arith.constant 0 : i32
    %c0_i32_0 = arith.constant 0 : i32
    %c0_i32_1 = arith.constant 0 : i32
    return %c0_i32, %c0_i32_0 : i32, i32
  }
  func.func @transform_3(%arg0: i32, %arg1: i32) -> (i32, i32) {
    %c0_i32 = arith.constant 0 : i32
    %c0_i32_0 = arith.constant 0 : i32
    %c0_i32_1 = arith.constant 0 : i32
    return %c0_i32, %c0_i32_0 : i32, i32
  }
  func.func @transform_4(%arg0: i32, %arg1: i32) -> (i32, i32) {
    %c0_i32 = arith.constant 0 : i32
    %c0_i32_0 = arith.constant 0 : i32
    %c0_i32_1 = arith.constant 0 : i32
    return %c0_i32, %c0_i32_0 : i32, i32
  }
  func.func @transform_5(%arg0: i32, %arg1: i32) -> (i32, i32) {
    %c0_i32 = arith.constant 0 : i32
    %c0_i32_0 = arith.constant 0 : i32
    return %arg0, %c0_i32 : i32, i32
  }
}

</mosaic_0001>

<llo_original>
// kernel: tpu_custom_call.1
$region0: #{tpu_custom_call.1}
  #allocation0 [shape = 'u32[]', space=smem, size = 0x4, offset = 0x4, fixed_abs, tag = 'smem constant byte address 0x4 - core index']
  #allocation1 [shape = 'u32[72,128]{1,0:T(1,128)}', space=vmem, size = 0x9000, scoped, tag = 'internal scratch']
  #allocation2 [shape = 'f32[8,128]{1,0:T(8,128)}', space=vmem, size = 0x1000, scoped, tag = 'scratch operand']
  %s0 = inlined_call_operand.hbm [shape: f32[8,768], index: 0, kind: input, shape index: {}]
  %s1 = inlined_call_operand.hbm [shape: bf16[768,128], index: 1, kind: input, shape index: {}]
  %s2 = inlined_call_operand.vmem [shape: f32[1,128], index: 2, kind: input, shape index: {}]
  %s3 = inlined_call_operand.hbm [shape: bf16[128,128], index: 3, kind: input, shape index: {}]
  %s4 = inlined_call_operand.vmem [shape: f32[1,128], index: 4, kind: input, shape index: {}]
  %s5 = inlined_call_operand.hbm [shape: f32[8,128], index: 5, kind: output, shape index: {}]
  %s6 = sld [smem:[#allocation0]]
  $region73: #{tpu_custom_call.1} parent=0
    _
  %s8 = ssub.s32 1, %s6
  %s9 = scalar_select 0, %s8, %s6
  $region1: #{tpu_custom_call.1} parent=0
    #allocation3 [shape = 'u8[16384]{0}', space=vmem, size = 0x4000, scoped, tag = 'input window, operand 0']
    #allocation4 [shape = 's32[2]{0}', space=sflag, size = 0x8, scoped, tag = 'scoped memory for tpu_custom_call.1']
    #allocation5 [shape = 's32[2]{0}', space=sflag, size = 0x8, scoped, tag = 'scoped memory for tpu_custom_call.1']
    #allocation6 [shape = 'u8[131072]{0}', space=vmem, size = 0x20000, scoped, tag = 'input window, operand 1']
    #allocation7 [shape = 's32[2]{0}', space=sflag, size = 0x8, scoped, tag = 'scoped memory for tpu_custom_call.1']
    #allocation8 [shape = 'u8[32768]{0}', space=vmem, size = 0x8000, scoped, tag = 'input window, operand 3, single buffered']
    #allocation9 [shape = 'u8[4096]{0}', space=vmem, size = 0x1000, scoped, tag = 'output window, operand 0, single buffered']
    %10 = vsyncpa [#allocation4], 0
    %s11 = scalar_lea.sflag [#allocation4], 1
    %12 = vsyncpa %s11, 0
    %13 = vsyncpa [#allocation7], 0
    %s14 = scalar_lea.sflag [#allocation7], 1
    %15 = vsyncpa %s14, 0
    %16 = vsyncpa [#allocation5], 0
    loop: start=0, step=1, limit=5
    $region2: #{tpu_custom_call.1} parent=1 // loop_pre_header
      _
    $region3: #{tpu_custom_call.1} parent=1 // loop_header
      %s18 = sphi 0, %s22
      %p19 = scmp.ge.s32.totalorder %s18, 5
      %s25 = sphi 0, %s37
      %s26 = sphi 0, %s33
      %s27 = sphi 0, %s25
      %s28 = sphi 0, %s26
      %s29 = sphi 0, %s27
      %s30 = sphi 0, %s28
      %s42 = sphi 0, %s44
      %s45 = sphi 0, %s42
      %s46 = sphi 0, %s45
      %s62 = sphi 0, %s46
      %s68 = sphi 0, %s70
      %s71 = sphi 0, %s68
      %s72 = sphi 0, %s71
      %s88 = sphi 0, %s72
      %s92 = sphi 0, %s92
      %s94 = sphi 0, %s92
      %s95 = sphi 0, %s94
      %s109 = sphi 0, %s95
      %s113 = sphi 0, %s113
      %s115 = sphi 0, %s113
      %s116 = sphi 0, %s115
      %s130 = sphi 0, %s116
      %s134 = sphi 0, %s134
      %s136 = sphi 0, %s134
      %s137 = sphi 0, %s136
      %s151 = sphi 0, %s137
      %s157 = sphi 0, %s159
      %s160 = sphi 0, %s157
      %s161 = sphi 0, %s160
      %s177 = sphi 0, %s161
    $region4: #{tpu_custom_call.1} parent=1 // loop_header_branch
      %21 = sbr.rel (%p19) target = $region8
    $region5: #{tpu_custom_call.1} parent=1 // loop_body
      %s23 = ssub.s32 %s18, 1
      %s24 = ssub.s32 %s18, 2
      %s31 = sadd.s32 1, %s26
      %p32 = scmp.ge.s32.totalorder %s31, 3
      %s33 = scalar_select %p32, 0, %s31
      %s34 = sadd.s32 1, %s25
      %s35 = scalar_select %p32, %s34, %s25
      %p36 = scmp.ge.s32.totalorder %s35, 1
      %s37 = scalar_select %p36, 0, %s35
      %s38 = ssub.s32 %s25, %s37
      %s39 = ssub.s32 %s26, %s33
      %s40 = sor.u32 %s38, %s39
      %p41 = scmp.eq.s32.totalorder %s40, 0
      %s43 = sadd.s32 %s42, 1
      %s44 = scalar_select %p41, %s42, %s43
      %p47 = pneg %p41
      %p48 = scmp.eq.s32.totalorder %s18, 2
      %p49 = por %p47, %p48
      %p50 = scmp.ne.s32.totalorder %s42, %s45
      %p51 = scmp.eq.s32.totalorder %s18, 0
      %p52 = por %p50, %p51
      %p53 = scmp.ne.s32.totalorder %s42, %s45
      %p54 = scmp.eq.s32.totalorder %s23, 2
      %p55 = por %p53, %p54
      %p56 = scmp.ne.s32.totalorder %s45, %s46
      %p57 = scmp.eq.s32.totalorder %s23, 0
      %p58 = por %p56, %p57
      %p59 = scmp.ne.s32.totalorder %s45, %s46
      %p60 = scmp.eq.s32.totalorder %s24, 2
      %p61 = por %p59, %p60
      %p63 = scmp.ne.s32.totalorder %s46, %s62
      %p64 = scmp.eq.s32.totalorder %s24, 0
      %p65 = por %p63, %p64
      %s66 = ssub.s32 %s26, %s33
      %p67 = scmp.eq.s32.totalorder %s66, 0
      %s69 = sadd.s32 %s68, 1
      %s70 = scalar_select %p67, %s68, %s69
      %p73 = pneg %p67
      %p74 = scmp.eq.s32.totalorder %s18, 2
      %p75 = por %p73, %p74
      %p76 = scmp.ne.s32.totalorder %s68, %s71
      %p77 = scmp.eq.s32.totalorder %s18, 0
      %p78 = por %p76, %p77
      %p79 = scmp.ne.s32.totalorder %s68, %s71
      %p80 = scmp.eq.s32.totalorder %s23, 2
      %p81 = por %p79, %p80
      %p82 = scmp.ne.s32.totalorder %s71, %s72
      %p83 = scmp.eq.s32.totalorder %s23, 0
      %p84 = por %p82, %p83
      %p85 = scmp.ne.s32.totalorder %s71, %s72
      %p86 = scmp.eq.s32.totalorder %s24, 2
      %p87 = por %p85, %p86
      %p89 = scmp.ne.s32.totalorder %s72, %s88
      %p90 = scmp.eq.s32.totalorder %s24, 0
      %p91 = por %p89, %p90
      %s93 = sadd.s32 %s92, 1
      %p96 = scmp.eq.s32.totalorder %s18, 2
      %p97 = scmp.ne.s32.totalorder %s92, %s94
      %p98 = scmp.eq.s32.totalorder %s18, 0
      %p99 = por %p97, %p98
      %p100 = scmp.ne.s32.totalorder %s92, %s94
      %p101 = scmp.eq.s32.totalorder %s23, 2
      %p102 = por %p100, %p101
      %p103 = scmp.ne.s32.totalorder %s94, %s95
      %p104 = scmp.eq.s32.totalorder %s23, 0
      %p105 = por %p103, %p104
      %p106 = scmp.ne.s32.totalorder %s94, %s95
      %p107 = scmp.eq.s32.totalorder %s24, 2
      %p108 = por %p106, %p107
      %p110 = scmp.ne.s32.totalorder %s95, %s109
      %p111 = scmp.eq.s32.totalorder %s24, 0
      %p112 = por %p110, %p111
      %s114 = sadd.s32 %s113, 1
      %p117 = scmp.eq.s32.totalorder %s18, 2
      %p118 = scmp.ne.s32.totalorder %s113, %s115
      %p119 = scmp.eq.s32.totalorder %s18, 0
      %p120 = por %p118, %p119
      %p121 = scmp.ne.s32.totalorder %s113, %s115
      %p122 = scmp.eq.s32.totalorder %s23, 2
      %p123 = por %p121, %p122
      %p124 = scmp.ne.s32.totalorder %s115, %s116
      %p125 = scmp.eq.s32.totalorder %s23, 0
      %p126 = por %p124, %p125
      %p127 = scmp.ne.s32.totalorder %s115, %s116
      %p128 = scmp.eq.s32.totalorder %s24, 2
      %p129 = por %p127, %p128
      %p131 = scmp.ne.s32.totalorder %s116, %s130
      %p132 = scmp.eq.s32.totalorder %s24, 0
      %p133 = por %p131, %p132
      %s135 = sadd.s32 %s134, 1
      %p138 = scmp.eq.s32.totalorder %s18, 2
      %p139 = scmp.ne.s32.totalorder %s134, %s136
      %p140 = scmp.eq.s32.totalorder %s18, 0
      %p141 = por %p139, %p140
      %p142 = scmp.ne.s32.totalorder %s134, %s136
      %p143 = scmp.eq.s32.totalorder %s23, 2
      %p144 = por %p142, %p143
      %p145 = scmp.ne.s32.totalorder %s136, %s137
      %p146 = scmp.eq.s32.totalorder %s23, 0
      %p147 = por %p145, %p146
      %p148 = scmp.ne.s32.totalorder %s136, %s137
      %p149 = scmp.eq.s32.totalorder %s24, 2
      %p150 = por %p148, %p149
      %p152 = scmp.ne.s32.totalorder %s137, %s151
      %p153 = scmp.eq.s32.totalorder %s24, 0
      %p154 = por %p152, %p153
      %s155 = ssub.s32 %s25, %s37
      %p156 = scmp.eq.s32.totalorder %s155, 0
      %s158 = sadd.s32 %s157, 1
      %s159 = scalar_select %p156, %s157, %s158
      %p162 = pneg %p156
      %p163 = scmp.eq.s32.totalorder %s18, 2
      %p164 = por %p162, %p163
      %p165 = scmp.ne.s32.totalorder %s157, %s160
      %p166 = scmp.eq.s32.totalorder %s18, 0
      %p167 = por %p165, %p166
      %p168 = scmp.ne.s32.totalorder %s157, %s160
      %p169 = scmp.eq.s32.totalorder %s23, 2
      %p170 = por %p168, %p169
      %p171 = scmp.ne.s32.totalorder %s160, %s161
      %p172 = scmp.eq.s32.totalorder %s23, 0
      %p173 = por %p171, %p172
      %p174 = scmp.ne.s32.totalorder %s160, %s161
      %p175 = scmp.eq.s32.totalorder %s24, 2
      %p176 = por %p174, %p175
      %p178 = scmp.ne.s32.totalorder %s161, %s177
      %p179 = scmp.eq.s32.totalorder %s24, 0
      %p180 = por %p178, %p179
      %p181 = scmp.le.s32.totalorder 1, %s18
      %p182 = scmp.lt.s32.totalorder %s18, 4
      %p183 = pnand %p181, %p182
      %p184 = pneg %p183
      // Predicated region
      $region9: #{tpu_custom_call.1} parent=5 // pred_check
        _
      $region10: #{tpu_custom_call.1} parent=5 // pred_check_branch
        %186 = sbr.rel (%p183) target = $region12
      $region11: #{tpu_custom_call.1} parent=5 // pred_region
        %s187 = ssub.s32 %s18, 1
        // Predicated region
        $region13: #{tpu_custom_call.1} parent=11 // pred_check
          %p188 = pneg %p105
        $region14: #{tpu_custom_call.1} parent=11 // pred_check_branch
          %190 = sbr.rel (%p188) target = $region16
        $region15: #{tpu_custom_call.1} parent=11 // pred_region
          _
        $region16: #{tpu_custom_call.1} parent=11 // pred_fallthru
          _
        // Predicated region
        $region17: #{tpu_custom_call.1} parent=11 // pred_check
          %p191 = pneg %p126
        $region18: #{tpu_custom_call.1} parent=11 // pred_check_branch
          %193 = sbr.rel (%p191) target = $region20
        $region19: #{tpu_custom_call.1} parent=11 // pred_region
          %195 = vsyncadd [#allocation7], 0
          %s196 = sshll.u32 %s3, 4
          %s197 = int_to_ptr.hbm [resolvable:$true] %s196
          %s198 = sshll.u32 [#allocation8], 4
          %s199 = int_to_ptr.vmem [resolvable:$true] %s198
          %204 = dma.hbm_to_vmem [thread:$0]  %s197, 1024, %s199, [#allocation7], 64, 64, 4
        $region20: #{tpu_custom_call.1} parent=11 // pred_fallthru
          _
        // Predicated region
        $region21: #{tpu_custom_call.1} parent=11 // pred_check
          %p205 = pneg %p147
        $region22: #{tpu_custom_call.1} parent=11 // pred_check_branch
          %207 = sbr.rel (%p205) target = $region24
        $region23: #{tpu_custom_call.1} parent=11 // pred_region
          _
        $region24: #{tpu_custom_call.1} parent=11 // pred_fallthru
          _
      $region12: #{tpu_custom_call.1} parent=5 // pred_fallthru
        _
      %p208 = scmp.lt.s32.totalorder %s18, 3
      // Predicated region
      $region25: #{tpu_custom_call.1} parent=5 // pred_check
        %p209 = pneg %p208
      $region26: #{tpu_custom_call.1} parent=5 // pred_check_branch
        %211 = sbr.rel (%p209) target = $region28
      $region27: #{tpu_custom_call.1} parent=5 // pred_region
        // Predicated region
        $region29: #{tpu_custom_call.1} parent=27 // pred_check
          %p212 = pneg %p52
        $region30: #{tpu_custom_call.1} parent=27 // pred_check_branch
          %214 = sbr.rel (%p212) target = $region32
        $region31: #{tpu_custom_call.1} parent=27 // pred_region
          %s215 = sand.u32 %s42, 1
          %s216 = scalar_lea.sflag [#allocation4], %s215
          %s217 = sand.u32 %s42, 1
          %s218 = smul.addr %s217, 16
          %s219 = scalar_lea.vmem [#allocation3], %s218
          %s220 = smul.u32 2, %s26
          %222 = vsyncadd %s216, 0
          %s223 = smul.addr %s25, 6
          %s224 = sadd.s32 %s220, %s223
          %s225 = smul.addr %s224, 8
          %s226 = scalar_lea.hbm %s0, %s225
          %s228 = sshll.u32 %s226, 4
          %s229 = int_to_ptr.hbm [resolvable:$true] %s228
          %s230 = sshll.u32 %s219, 4
          %s231 = int_to_ptr.vmem [resolvable:$true] %s230
          %233 = dma.hbm_to_vmem [thread:$0]  %s229, 256, %s231, %s216
        $region32: #{tpu_custom_call.1} parent=27 // pred_fallthru
          _
        // Predicated region
        $region33: #{tpu_custom_call.1} parent=27 // pred_check
          %p234 = pneg %p78
        $region34: #{tpu_custom_call.1} parent=27 // pred_check_branch
          %236 = sbr.rel (%p234) target = $region36
        $region35: #{tpu_custom_call.1} parent=27 // pred_region
          %s237 = sand.u32 %s18, 1
          %s238 = scalar_lea.sflag [#allocation7], %s237
          %s239 = sand.u32 %s68, 1
          %s240 = smul.addr %s239, 128
          %s241 = scalar_lea.vmem [#allocation6], %s240
          %s242 = smul.u32 32, %s26
          %244 = vsyncadd %s238, 0
          %s245 = smul.addr %s242, 4
          %s246 = scalar_lea.hbm %s1, %s245
          %s247 = sshll.u32 %s246, 4
          %s248 = int_to_ptr.hbm [resolvable:$true] %s247
          %s249 = sshll.u32 %s241, 4
          %s250 = int_to_ptr.vmem [resolvable:$true] %s249
          %255 = dma.hbm_to_vmem [thread:$0]  %s248, 2048, %s250, %s238, 64, 64, 4
        $region36: #{tpu_custom_call.1} parent=27 // pred_fallthru
          _
      $region28: #{tpu_custom_call.1} parent=5 // pred_fallthru
        _
      %p256 = scmp.le.s32.totalorder 1, %s18
      %p257 = scmp.lt.s32.totalorder %s18, 4
      %p258 = pnand %p256, %p257
      %p259 = pneg %p258
      // Predicated region
      $region37: #{tpu_custom_call.1} parent=5 // pred_check
        _
      $region38: #{tpu_custom_call.1} parent=5 // pred_check_branch
        %261 = sbr.rel (%p258) target = $region40
      $region39: #{tpu_custom_call.1} parent=5 // pred_region
        %s262 = ssub.s32 %s18, 1
        %s263 = sand.u32 %s45, 1
        %s264 = scalar_lea.sflag [#allocation4], %s263
        %s265 = sand.u32 %s45, 1
        %s266 = smul.addr %s265, 16
        %s267 = scalar_lea.vmem [#allocation3], %s266
        // Predicated region
        $region41: #{tpu_custom_call.1} parent=39 // pred_check
          %p268 = pneg %p58
        $region42: #{tpu_custom_call.1} parent=39 // pred_check_branch
          %270 = sbr.rel (%p268) target = $region44
        $region43: #{tpu_custom_call.1} parent=39 // pred_region
          %272 = dma.done %s264, 256
        $region44: #{tpu_custom_call.1} parent=39 // pred_fallthru
          _
        %s273 = sand.u32 %s23, 1
        %s274 = scalar_lea.sflag [#allocation7], %s273
        %s275 = sand.u32 %s71, 1
        %s276 = smul.addr %s275, 128
        %s277 = scalar_lea.vmem [#allocation6], %s276
        // Predicated region
        $region45: #{tpu_custom_call.1} parent=39 // pred_check
          %p278 = pneg %p84
        $region46: #{tpu_custom_call.1} parent=39 // pred_check_branch
          %280 = sbr.rel (%p278) target = $region48
        $region47: #{tpu_custom_call.1} parent=39 // pred_region
          %282 = dma.done %s274, 2048
        $region48: #{tpu_custom_call.1} parent=39 // pred_fallthru
          _
        // Predicated region
        $region49: #{tpu_custom_call.1} parent=39 // pred_check
          %p283 = pneg %p126
        $region50: #{tpu_custom_call.1} parent=39 // pred_check_branch
          %285 = sbr.rel (%p283) target = $region52
        $region51: #{tpu_custom_call.1} parent=39 // pred_region
          %287 = dma.done [#allocation7], 1024
        $region52: #{tpu_custom_call.1} parent=39 // pred_fallthru
          _
        %s288 = sand.u32 %s45, 1
        %s289 = scalar_lea.sflag [#allocation4], %s288
        %s290 = sand.u32 %s45, 1
        %s291 = smul.addr %s290, 16
        %s292 = scalar_lea.vmem [#allocation3], %s291
        %p293 = pneg %p58
        %p294 = pneg %p55
        %s295 = sand.u32 %s23, 1
        %s296 = scalar_lea.sflag [#allocation7], %s295
        %s297 = sand.u32 %s71, 1
        %s298 = smul.addr %s297, 128
        %s299 = scalar_lea.vmem [#allocation6], %s298
        %p300 = pneg %p84
        %p301 = pneg %p81
        %p302 = pneg %p105
        %p303 = pneg %p102
        %p304 = pneg %p126
        %p305 = pneg %p123
        %p306 = pneg %p147
        %p307 = pneg %p144
        %p308 = pneg %p173
        %p309 = pneg %p170
        %s310 = smul.u32 2, %s28
        %s311 = smul.u32 32, %s28
        %p312 = scmp.eq.s32.totalorder %s28, 0
        // Predicated region
        $region53: #{tpu_custom_call.1} parent=39 // pred_check
          %p313 = pneg %p312
        $region54: #{tpu_custom_call.1} parent=39 // pred_check_branch
          %315 = sbr.rel (%p313) target = $region56
        $region55: #{tpu_custom_call.1} parent=39 // pred_region
          %v316 = vld [vmem:[%s2] sm:$0x1]
          %v318 = vperm.slane %v316, 0
          %320 = vst [vmem:[#allocation2] sm:$0xff] %v318
        $region56: #{tpu_custom_call.1} parent=39 // pred_fallthru
          _
        %v321 = vld [vmem:[#allocation2] sm:$0xff]
        %v322 = vld [vmem:[%s267] sm:$0xff]
        %v323 = vld [vmem:[%s267 + $0x8] sm:$0xff]
        %v324 = vpack.c.bf16 %v322, %v322
        %v325 = vpack.c.bf16 %v323, %v323
        %v326 = vld [vmem:[%s277] sm:$0xf]
        %v327 = vld [vmem:[%s277 + $0x4] sm:$0xf]
        %v328 = vld [vmem:[%s277 + $0x8] sm:$0xf]
        %v329 = vld [vmem:[%s277 + $0xc] sm:$0xf]
        %v330 = vld [vmem:[%s277 + $0x10] sm:$0xf]
        %v331 = vld [vmem:[%s277 + $0x14] sm:$0xf]
        %v332 = vld [vmem:[%s277 + $0x18] sm:$0xf]
        %v333 = vld [vmem:[%s277 + $0x1c] sm:$0xf]
        %v334 = vld [vmem:[%s277 + $0x20] sm:$0xf]
        %v335 = vld [vmem:[%s277 + $0x24] sm:$0xf]
        %v336 = vld [vmem:[%s277 + $0x28] sm:$0xf]
        %v337 = vld [vmem:[%s277 + $0x2c] sm:$0xf]
        %v338 = vld [vmem:[%s277 + $0x30] sm:$0xf]
        %v339 = vld [vmem:[%s277 + $0x34] sm:$0xf]
        %v340 = vld [vmem:[%s277 + $0x38] sm:$0xf]
        %v341 = vld [vmem:[%s277 + $0x3c] sm:$0xf]
        %v342 = vld [vmem:[%s277 + $0x40] sm:$0xf]
        %v343 = vld [vmem:[%s277 + $0x44] sm:$0xf]
        %v344 = vld [vmem:[%s277 + $0x48] sm:$0xf]
        %v345 = vld [vmem:[%s277 + $0x4c] sm:$0xf]
        %v346 = vld [vmem:[%s277 + $0x50] sm:$0xf]
        %v347 = vld [vmem:[%s277 + $0x54] sm:$0xf]
        %v348 = vld [vmem:[%s277 + $0x58] sm:$0xf]
        %v349 = vld [vmem:[%s277 + $0x5c] sm:$0xf]
        %v350 = vld [vmem:[%s277 + $0x60] sm:$0xf]
        %v351 = vld [vmem:[%s277 + $0x64] sm:$0xf]
        %v352 = vld [vmem:[%s277 + $0x68] sm:$0xf]
        %v353 = vld [vmem:[%s277 + $0x6c] sm:$0xf]
        %v354 = vld [vmem:[%s277 + $0x70] sm:$0xf]
        %v355 = vld [vmem:[%s277 + $0x74] sm:$0xf]
        %v356 = vld [vmem:[%s277 + $0x78] sm:$0xf]
        %v357 = vld [vmem:[%s277 + $0x7c] sm:$0xf]
        %v390 = vunpack.c.l.b16 %v326
        %v391 = vunpack.c.l.b16 %v327
        %v392 = vunpack.c.l.b16 %v328
        %v393 = vunpack.c.l.b16 %v329
        %v394 = vunpack.c.l.b16 %v330
        %v395 = vunpack.c.l.b16 %v331
        %v396 = vunpack.c.l.b16 %v332
        %v397 = vunpack.c.l.b16 %v333
        %v398 = vunpack.c.l.b16 %v334
        %v399 = vunpack.c.l.b16 %v335
        %v400 = vunpack.c.l.b16 %v336
        %v401 = vunpack.c.l.b16 %v337
        %v402 = vunpack.c.l.b16 %v338
        %v403 = vunpack.c.l.b16 %v339
        %v404 = vunpack.c.l.b16 %v340
        %v405 = vunpack.c.l.b16 %v341
        %v406 = vunpack.c.l.b16 %v342
        %v407 = vunpack.c.l.b16 %v343
        %v408 = vunpack.c.l.b16 %v344
        %v409 = vunpack.c.l.b16 %v345
        %v410 = vunpack.c.l.b16 %v346
        %v411 = vunpack.c.l.b16 %v347
        %v412 = vunpack.c.l.b16 %v348
        %v413 = vunpack.c.l.b16 %v349
        %v414 = vunpack.c.l.b16 %v350
        %v415 = vunpack.c.l.b16 %v351
        %v416 = vunpack.c.l.b16 %v352
        %v417 = vunpack.c.l.b16 %v353
        %v418 = vunpack.c.l.b16 %v354
        %v419 = vunpack.c.l.b16 %v355
        %v420 = vunpack.c.l.b16 %v356
        %v421 = vunpack.c.l.b16 %v357
        %v422 = vpack.c.b16 %v391, %v390
        %v423 = vpack.c.b16 %v393, %v392
        %v424 = vpack.c.b16 %v395, %v394
        %v425 = vpack.c.b16 %v397, %v396
        %v426 = vpack.c.b16 %v399, %v398
        %v427 = vpack.c.b16 %v401, %v400
        %v428 = vpack.c.b16 %v403, %v402
        %v429 = vpack.c.b16 %v405, %v404
        %v430 = vpack.c.b16 %v407, %v406
        %v431 = vpack.c.b16 %v409, %v408
        %v432 = vpack.c.b16 %v411, %v410
        %v433 = vpack.c.b16 %v413, %v412
        %v434 = vpack.c.b16 %v415, %v414
        %v435 = vpack.c.b16 %v417, %v416
        %v436 = vpack.c.b16 %v419, %v418
        %v437 = vpack.c.b16 %v421, %v420
        %454 = vmatpush.bf16.msra.mxu0 %v429
        %455 = vmatpush.bf16.msra.mxu0 %v428
        %456 = vmatpush.bf16.msra.mxu0 %v427
        %457 = vmatpush.bf16.msra.mxu0 %v426
        %458 = vmatpush.bf16.msra.mxu0 %v425
        %459 = vmatpush.bf16.msra.mxu0 %v424
        %460 = vmatpush.bf16.msra.mxu0 %v423
        %461 = vmatpush.bf16.msra.mxu0 %v422
        %462 = vmatmul.bf16.gmra.mxu0 %v324
        %v463 = vpop.f32.mrf.mxu0
        %v464 = vadd.f32 0.0, %v463
        %v465 = vpop.f32.mrf.mxu0
        %466 = vdwg.mxu0
        %467 = vmatpush.bf16.msra.mxu0 %v437
        %468 = vmatpush.bf16.msra.mxu0 %v436
        %469 = vmatpush.bf16.msra.mxu0 %v435
        %470 = vmatpush.bf16.msra.mxu0 %v434
        %471 = vmatpush.bf16.msra.mxu0 %v433
        %472 = vmatpush.bf16.msra.mxu0 %v432
        %473 = vmatpush.bf16.msra.mxu0 %v431
        %474 = vmatpush.bf16.msra.mxu0 %v430
        %475 = vmatmul.bf16.gmra.mxu0 %v325
        %v476 = vpop.f32.mrf.mxu0
        %v477 = vadd.f32 %v464, %v476
        %v478 = vpop.f32.mrf.mxu0
        %479 = vdwg.mxu0
        %v480 = vadd.f32 %v321, %v477
        %481 = vst [vmem:[#allocation2] sm:$0xff] %v480
        %p482 = scmp.eq.s32.totalorder %s28, 2
        // Predicated region
        $region57: #{tpu_custom_call.1} parent=39 // pred_check
          %p483 = pneg %p482
        $region58: #{tpu_custom_call.1} parent=39 // pred_check_branch
          %485 = sbr.rel (%p483) target = $region60
        $region59: #{tpu_custom_call.1} parent=39 // pred_region
          %v486 = vld [vmem:[#allocation2] sm:$0xff]
          %v487 = vmax.f32 %v486, 0.0
          %v488 = vpack.c.bf16 %v487, %v487
          %v489 = vld [vmem:[#allocation8] sm:$0xf]
          %v490 = vld [vmem:[#allocation8 + $0x4] sm:$0xf]
          %v491 = vld [vmem:[#allocation8 + $0x8] sm:$0xf]
          %v492 = vld [vmem:[#allocation8 + $0xc] sm:$0xf]
          %v493 = vld [vmem:[#allocation8 + $0x10] sm:$0xf]
          %v494 = vld [vmem:[#allocation8 + $0x14] sm:$0xf]
          %v495 = vld [vmem:[#allocation8 + $0x18] sm:$0xf]
          %v496 = vld [vmem:[#allocation8 + $0x1c] sm:$0xf]
          %v497 = vld [vmem:[#allocation8 + $0x20] sm:$0xf]
          %v498 = vld [vmem:[#allocation8 + $0x24] sm:$0xf]
          %v499 = vld [vmem:[#allocation8 + $0x28] sm:$0xf]
          %v500 = vld [vmem:[#allocation8 + $0x2c] sm:$0xf]
          %v501 = vld [vmem:[#allocation8 + $0x30] sm:$0xf]
          %v502 = vld [vmem:[#allocation8 + $0x34] sm:$0xf]
          %v503 = vld [vmem:[#allocation8 + $0x38] sm:$0xf]
          %v504 = vld [vmem:[#allocation8 + $0x3c] sm:$0xf]
          %v505 = vld [vmem:[%s4] sm:$0x1]
          %v507 = vperm.slane %v505, 0
          %v525 = vunpack.c.l.b16 %v489
          %v526 = vunpack.c.l.b16 %v490
          %v527 = vunpack.c.l.b16 %v491
          %v528 = vunpack.c.l.b16 %v492
          %v529 = vunpack.c.l.b16 %v493
          %v530 = vunpack.c.l.b16 %v494
          %v531 = vunpack.c.l.b16 %v495
          %v532 = vunpack.c.l.b16 %v496
          %v533 = vunpack.c.l.b16 %v497
          %v534 = vunpack.c.l.b16 %v498
          %v535 = vunpack.c.l.b16 %v499
          %v536 = vunpack.c.l.b16 %v500
          %v537 = vunpack.c.l.b16 %v501
          %v538 = vunpack.c.l.b16 %v502
          %v539 = vunpack.c.l.b16 %v503
          %v540 = vunpack.c.l.b16 %v504
          %v541 = vpack.c.b16 %v526, %v525
          %v542 = vpack.c.b16 %v528, %v527
          %v543 = vpack.c.b16 %v530, %v529
          %v544 = vpack.c.b16 %v532, %v531
          %v545 = vpack.c.b16 %v534, %v533
          %v546 = vpack.c.b16 %v536, %v535
          %v547 = vpack.c.b16 %v538, %v537
          %v548 = vpack.c.b16 %v540, %v539
          %557 = vmatpush.bf16.msra.mxu0 %v548
          %558 = vmatpush.bf16.msra.mxu0 %v547
          %559 = vmatpush.bf16.msra.mxu0 %v546
          %560 = vmatpush.bf16.msra.mxu0 %v545
          %561 = vmatpush.bf16.msra.mxu0 %v544
          %562 = vmatpush.bf16.msra.mxu0 %v543
          %563 = vmatpush.bf16.msra.mxu0 %v542
          %564 = vmatpush.bf16.msra.mxu0 %v541
          %565 = vmatmul.bf16.gmra.mxu0 %v488
          %v566 = vpop.f32.mrf.mxu0
          %v567 = vadd.f32 %v507, %v566
          %v568 = vpop.f32.mrf.mxu0
          %569 = vdwg.mxu0
          %570 = vst [vmem:[#allocation9] sm:$0xff] %v567
        $region60: #{tpu_custom_call.1} parent=39 // pred_fallthru
          _
        // Predicated region
        $region61: #{tpu_custom_call.1} parent=39 // pred_check
          %p571 = pneg %p170
        $region62: #{tpu_custom_call.1} parent=39 // pred_check_branch
          %573 = sbr.rel (%p571) target = $region64
        $region63: #{tpu_custom_call.1} parent=39 // pred_region
          %575 = vsyncadd [#allocation5], 0
          %s576 = smul.addr %s27, 8
          %s577 = scalar_lea.hbm %s5, %s576
          %s579 = sshll.u32 [#allocation9], 4
          %s580 = int_to_ptr.vmem [resolvable:$true] %s579
          %s581 = sshll.u32 %s577, 4
          %s582 = int_to_ptr.hbm [resolvable:$true] %s581
          %584 = dma.vmem_to_hbm [thread:$0]  %s580, 128, %s582, [#allocation5]
        $region64: #{tpu_custom_call.1} parent=39 // pred_fallthru
          _
        // Predicated region
        $region65: #{tpu_custom_call.1} parent=39 // pred_check
          %p585 = pneg %p170
        $region66: #{tpu_custom_call.1} parent=39 // pred_check_branch
          %587 = sbr.rel (%p585) target = $region68
        $region67: #{tpu_custom_call.1} parent=39 // pred_region
          %589 = dma.done [#allocation5], 128
        $region68: #{tpu_custom_call.1} parent=39 // pred_fallthru
          _
      $region40: #{tpu_custom_call.1} parent=5 // pred_fallthru
        _
      %p590 = scmp.le.s32.totalorder 2, %s18
      // Predicated region
      $region69: #{tpu_custom_call.1} parent=5 // pred_check
        %p591 = pneg %p590
      $region70: #{tpu_custom_call.1} parent=5 // pred_check_branch
        %593 = sbr.rel (%p591) target = $region72
      $region71: #{tpu_custom_call.1} parent=5 // pred_region
        %s594 = ssub.s32 %s18, 2
      $region72: #{tpu_custom_call.1} parent=5 // pred_fallthru
        _
    $region6: #{tpu_custom_call.1} parent=1 // loop_footer
      %s22 = sadd.s32 1, %s18
    $region7: #{tpu_custom_call.1} parent=1 // loop_footer_branch
      %17 = sbr.rel target = $region3
    $region8: #{tpu_custom_call.1} parent=1 // loop_exit
      _
    %595 = vsyncpa [#allocation4], 1
    %s596 = scalar_lea.sflag [#allocation4], 1
    %597 = vsyncpa %s596, 1
    %598 = vsyncpa [#allocation7], 1
    %s599 = scalar_lea.sflag [#allocation7], 1
    %600 = vsyncpa %s599, 1
    %601 = vsyncpa [#allocation5], 1
    %s602 = scalar_lea.sflag [#allocation5], 1
    %603 = vsyncpa %s602, 1

</llo_original>
